<compile_context>
chip_gen: v5e
topology: v5e:2x2
jax: 0.10.0
libtpu: 0.0.40
codegen_flags: <defaults>
</compile_context>

<pallas_src>
import jax
import jax.numpy as jnp
from jax.experimental import pallas as pl
from jax.experimental.pallas import tpu as pltpu

LN_EPS = 1e-5
LANE = 128                          # lane width: class dim padded/tiled in multiples of this
SUBLANE = 8                         # sublane width: batch tiles are multiples of this
MAX_TILE_B = 4096                   # hard ceiling on batch-tile rows
MAX_TILE_C = 2048                   # hard ceiling on class-tile width (multiple of 128)
STEP_BYTE_BUDGET = 2 * 1024 * 1024  # target HBM bytes moved per grid step (~2 MiB)
PALLAS_MIN_ELEMS = 1 << 16          # below this (B*D), plain XLA wins on launch overhead


def _round_up(x, m):
    return (x + m - 1) // m * m


def _cdiv(a, b):
    return (a + b - 1) // b


def classifier_kernel(x_ref, gamma_ref, beta_ref, w_ref, bias_ref, o_ref):
    """Fused LayerNorm + linear head for one (batch-tile, class-tile) grid point.

    x_ref:     [TILE_B, D]      input features (streamed per batch tile)
    gamma_ref: [1, D]           LayerNorm weight   (VMEM-resident)
    beta_ref:  [1, D]           LayerNorm bias     (VMEM-resident)
    w_ref:     [D, TILE_C]      head weight tile, pre-transposed + lane-padded
    bias_ref:  [1, TILE_C]      head bias tile, lane-padded
    o_ref:     [TILE_B, TILE_C] logits (lane-dense stores)
    """
    x = x_ref[...].astype(jnp.float32)

    # LayerNorm over the embedding dim (biased variance, eps=1e-5: torch defaults).
    # Recomputed per class tile: trivially cheap VPU work vs. the weight/output DMA,
    # and it keeps both grid axes safely 'parallel' (no cross-step scratch carry).
    mean = jnp.mean(x, axis=-1, keepdims=True)
    xc = x - mean
    var = jnp.mean(xc * xc, axis=-1, keepdims=True)
    inv = jax.lax.rsqrt(var + LN_EPS)
    xn = xc * inv
    xn = xn * gamma_ref[...].astype(jnp.float32) + beta_ref[...].astype(jnp.float32)

    # Linear head on the MXU: feed the weight's native dtype, accumulate f32.
    w = w_ref[...]
    logits = jnp.dot(xn.astype(w.dtype), w, preferred_element_type=jnp.float32)
    logits = logits + bias_ref[...].astype(jnp.float32)

    o_ref[...] = logits.astype(o_ref.dtype)


def prepare_classifier_params(ln_weight, ln_bias, head_weight, head_bias,
                              weight_dtype=None):
    """One-time (model-setup) prep: reshape LN params, transpose + lane-pad the head.

    head_weight: [C, D] (PyTorch layout), head_bias: [C].
    The class dim is padded so it splits evenly into lane-dense tiles of width
    tile_c (multiple of 128, <= MAX_TILE_C).  Optionally casts the weight to
    `weight_dtype` (e.g. jnp.bfloat16) — MXU accumulation stays f32 in the kernel.
    """
    C, D = head_weight.shape

    c128 = _round_up(C, LANE)
    num_c_tiles = _cdiv(c128, MAX_TILE_C)
    tile_c = _round_up(_cdiv(c128, num_c_tiles), LANE)
    C_pad = tile_c * num_c_tiles

    gamma = ln_weight.reshape(1, D)
    beta = ln_bias.reshape(1, D)

    w_dtype = head_weight.dtype if weight_dtype is None else weight_dtype
    w_t = jnp.zeros((D, C_pad), dtype=w_dtype)
    w_t = w_t.at[:, :C].set(head_weight.T.astype(w_dtype))   # transpose + pad ONCE
    bias = jnp.zeros((1, C_pad), dtype=head_bias.dtype)
    bias = bias.at[0, :C].set(head_bias)

    return {"gamma": gamma, "beta": beta, "w_t": w_t, "bias": bias,
            "embed_dim": D, "nb_classes": C, "nb_classes_padded": C_pad,
            "tile_c": tile_c, "num_c_tiles": num_c_tiles}


def _classifier_forward_xla(x, params):
    """Plain fused-XLA path for tiny problems (Pallas launch overhead dominates)."""
    C = params["nb_classes"]
    xf = x.astype(jnp.float32)
    mean = jnp.mean(xf, axis=-1, keepdims=True)
    var = jnp.mean((xf - mean) ** 2, axis=-1, keepdims=True)
    xn = (xf - mean) * jax.lax.rsqrt(var + LN_EPS)
    xn = xn * params["gamma"].astype(jnp.float32) + params["beta"].astype(jnp.float32)
    w = params["w_t"][:, :C]
    out = xn.astype(w.dtype) @ w + params["bias"][0, :C].astype(jnp.float32)
    return out.astype(x.dtype)


def classifier_forward(x, params, *, return_padded=False, use_pallas=None):
    """x: [B, D]; params: output of prepare_classifier_params. Returns [B, C] logits
    (or the padded [B_pad, C_pad] block when return_padded=True)."""
    B, D = x.shape
    assert D == params["embed_dim"]
    C = params["nb_classes"]
    C_pad = params["nb_classes_padded"]
    tile_c = params["tile_c"]
    num_c_tiles = params["num_c_tiles"]

    if use_pallas is None:
        use_pallas = (B * D) >= PALLAS_MIN_ELEMS
    if not use_pallas:
        return _classifier_forward_xla(x, params)

    # --- batch tiling: byte-budgeted ceiling, then balanced tiles ---------------
    out_itemsize = jnp.dtype(x.dtype).itemsize
    row_bytes = D * jnp.dtype(x.dtype).itemsize + tile_c * out_itemsize
    budget_rows = max(STEP_BYTE_BUDGET // max(row_bytes, 1), SUBLANE)
    max_tile_b = max(min(MAX_TILE_B, _round_up(budget_rows, SUBLANE)), SUBLANE)

    B8 = _round_up(B, SUBLANE)
    num_b_tiles = _cdiv(B8, max_tile_b)
    tile_b = _round_up(_cdiv(B8, num_b_tiles), SUBLANE)   # balanced, multiple of 8
    B_pad = tile_b * num_b_tiles

    if B_pad != B:
        # jnp.pad fuses into the producer; no full materialized copy of x.
        x_in = jnp.pad(x, ((0, B_pad - B), (0, 0)))
    else:
        x_in = x

    # --- VMEM budget: double-buffered streams + f32 working set, with headroom ---
    w_item = jnp.dtype(params["w_t"].dtype).itemsize
    est = (2 * tile_b * D * jnp.dtype(x.dtype).itemsize     # x tiles (double-buffered)
           + 2 * tile_b * tile_c * out_itemsize             # out tiles (double-buffered)
           + 2 * D * tile_c * w_item                        # weight tile(s)
           + 2 * tile_c * 4 + 4 * D * 4                     # bias / gamma / beta
           + tile_b * D * 4 + tile_b * tile_c * 4)          # f32 LN + logits working set
    try:
        phys_vmem = pltpu.get_tpu_info().vmem_capacity_bytes
    except Exception:
        phys_vmem = 64 * 1024 * 1024                        # conservative (v7x per-TC)
    vmem_cap = (phys_vmem * 3) // 4                          # leave compiler headroom
    vmem_limit = min(max(2 * est, 32 * 1024 * 1024), vmem_cap)

    out = pl.pallas_call(
        classifier_kernel,
        out_shape=jax.ShapeDtypeStruct((B_pad, C_pad), x.dtype),
        grid=(num_b_tiles, num_c_tiles),
        in_specs=[
            pl.BlockSpec((tile_b, D), lambda i, j: (i, 0)),    # x: per batch tile (not re-fetched over j)
            pl.BlockSpec((1, D), lambda i, j: (0, 0)),         # gamma: resident
            pl.BlockSpec((1, D), lambda i, j: (0, 0)),         # beta: resident
            pl.BlockSpec((D, tile_c), lambda i, j: (0, j)),    # weight: streamed per class tile
            pl.BlockSpec((1, tile_c), lambda i, j: (0, j)),    # bias: streamed per class tile
        ],
        out_specs=pl.BlockSpec((tile_b, tile_c), lambda i, j: (i, j)),
        compiler_params=pltpu.CompilerParams(
            dimension_semantics=("parallel", "parallel"),      # no reduction axis
            vmem_limit_bytes=int(vmem_limit),
        ),
    )(x_in, params["gamma"], params["beta"], params["w_t"], params["bias"])

    if return_padded:
        return out
    if B_pad == B and C_pad == C:
        return out
    return out[:B, :C]


def classifier_reference(x, ln_weight, ln_bias, head_weight, head_bias):
    """Pure-JAX reference mirroring the PyTorch forward (cosine=False, norm=True)."""
    xf = x.astype(jnp.float32)
    mean = jnp.mean(xf, axis=-1, keepdims=True)
    var = jnp.mean((xf - mean) ** 2, axis=-1, keepdims=True)
    xn = (xf - mean) * jax.lax.rsqrt(var + LN_EPS)
    xn = xn * ln_weight + ln_bias
    return xn @ head_weight.T.astype(jnp.float32) + head_bias


if __name__ == "__main__":
    # Module config: Classifier(embed_dim=32, nb_total_classes=16, nb_base_classes=10, ...)
    B = 8          # batch
    D = 32         # embed_dim
    C = 10         # nb_base_classes

    key = jax.random.PRNGKey(0)
    kx, kw, kb, kx2 = jax.random.split(key, 4)

    x = jax.random.normal(kx, (B, D), dtype=jnp.float32)

    # Synthetic deterministic init (mimics nn.Linear uniform(-1/sqrt(D), 1/sqrt(D))).
    bound = 1.0 / (D ** 0.5)
    head_weight = jax.random.uniform(kw, (C, D), minval=-bound, maxval=bound, dtype=jnp.float32)
    head_bias = jax.random.uniform(kb, (C,), minval=-bound, maxval=bound, dtype=jnp.float32)
    # nn.LayerNorm default init: weight=1, bias=0.
    ln_weight = jnp.ones((D,), dtype=jnp.float32)
    ln_bias = jnp.zeros((D,), dtype=jnp.float32)

    # One-time param prep (transpose + lane-pad happens here, not per forward call).
    params = prepare_classifier_params(ln_weight, ln_bias, head_weight, head_bias)

    # --- exact f32 path (forced through the Pallas kernel) ---
    out = classifier_forward(x, params, use_pallas=True)
    out = jax.block_until_ready(out)
    ref = classifier_reference(x, ln_weight, ln_bias, head_weight, head_bias)
    assert out.shape == (B, C)
    assert jnp.allclose(out, ref, atol=1e-5, rtol=1e-5), "mismatch vs pure-JAX reference (f32)"

    # --- batch-padding path (B not a multiple of 8) exercises jnp.pad + slice ---
    B2 = 19
    x2 = jax.random.normal(kx2, (B2, D), dtype=jnp.float32)
    out2 = jax.block_until_ready(classifier_forward(x2, params, use_pallas=True))
    ref2 = classifier_reference(x2, ln_weight, ln_bias, head_weight, head_bias)
    assert out2.shape == (B2, C)
    assert jnp.allclose(out2, ref2, atol=1e-5, rtol=1e-5), "mismatch vs reference (padded batch)"

    # --- bf16-weight option (halved weight VMEM/DMA, f32 accumulation) ---
    params_bf16 = prepare_classifier_params(ln_weight, ln_bias, head_weight, head_bias,
                                            weight_dtype=jnp.bfloat16)
    out_bf16 = jax.block_until_ready(classifier_forward(x, params_bf16, use_pallas=True))
    assert out_bf16.shape == (B, C)
    assert jnp.allclose(out_bf16, ref, atol=1e-1, rtol=1e-1), "mismatch vs reference (bf16 weights)"

    # TODO(synk): cosine / 'pcc' branch of the PyTorch module is not implemented
    # (default config uses cosine=False, so the plain head path above is the forward).

    print("KERNEL_OK")
</pallas_src>

<mosaic_0001>
module attributes {stable_mosaic.version = 11 : i64} {
  func.func @classifier_kernel(%arg0: i32, %arg1: i32, %arg2: memref<8x32xf32, #tpu.memory_space<vmem>>, %arg3: memref<1x32xf32, #tpu.memory_space<vmem>>, %arg4: memref<1x32xf32, #tpu.memory_space<vmem>>, %arg5: memref<32x128xf32, #tpu.memory_space<vmem>>, %arg6: memref<1x128xf32, #tpu.memory_space<vmem>>, %arg7: memref<8x128xf32, #tpu.memory_space<vmem>>) attributes {dimension_semantics = [#tpu.dimension_semantics<parallel>, #tpu.dimension_semantics<parallel>], iteration_bounds = array<i64: 1, 1>, scalar_prefetch = 0 : i64, scratch_operands = 0 : i64, tpu.core_type = #tpu.core_type<tc>, window_params = [{transform_indices = @transform_0, window_bounds = array<i64: 8, 32>}, {pipeline_mode = #tpu.pipeline_mode<synchronous>, transform_indices = @transform_1, window_bounds = array<i64: 1, 32>}, {pipeline_mode = #tpu.pipeline_mode<synchronous>, transform_indices = @transform_2, window_bounds = array<i64: 1, 32>}, {transform_indices = @transform_3, window_bounds = array<i64: 32, 128>}, {transform_indices = @transform_4, window_bounds = array<i64: 1, 128>}, {transform_indices = @transform_5, window_bounds = array<i64: 8, 128>}]} {
    %c0 = arith.constant 0 : index
    %c0_0 = arith.constant 0 : index
    %0 = vector.load %arg2[%c0, %c0_0] : memref<8x32xf32, #tpu.memory_space<vmem>>, vector<8x32xf32>
    %cst = arith.constant dense<0.000000e+00> : vector<8xf32>
    %1 = vector.multi_reduction <add>, %0, %cst [1] : vector<8x32xf32> to vector<8xf32>
    %2 = vector.shape_cast %1 : vector<8xf32> to vector<8x1xf32>
    %cst_1 = arith.constant 3.200000e+01 : f32
    %3 = vector.broadcast %cst_1 : f32 to vector<8x1xf32>
    %4 = arith.divf %2, %3 : vector<8x1xf32>
    %5 = vector.broadcast %4 : vector<8x1xf32> to vector<8x32xf32>
    %6 = arith.subf %0, %5 : vector<8x32xf32>
    %7 = arith.mulf %6, %6 : vector<8x32xf32>
    %cst_2 = arith.constant dense<0.000000e+00> : vector<8xf32>
    %8 = vector.multi_reduction <add>, %7, %cst_2 [1] : vector<8x32xf32> to vector<8xf32>
    %9 = vector.shape_cast %8 : vector<8xf32> to vector<8x1xf32>
    %cst_3 = arith.constant 3.200000e+01 : f32
    %10 = vector.broadcast %cst_3 : f32 to vector<8x1xf32>
    %11 = arith.divf %9, %10 : vector<8x1xf32>
    %cst_4 = arith.constant 9.99999974E-6 : f32
    %12 = vector.broadcast %cst_4 : f32 to vector<8x1xf32>
    %13 = arith.addf %11, %12 : vector<8x1xf32>
    %14 = math.rsqrt %13 : vector<8x1xf32>
    %15 = vector.broadcast %14 : vector<8x1xf32> to vector<8x32xf32>
    %16 = arith.mulf %6, %15 : vector<8x32xf32>
    %c0_5 = arith.constant 0 : index
    %c0_6 = arith.constant 0 : index
    %17 = vector.load %arg3[%c0_5, %c0_6] : memref<1x32xf32, #tpu.memory_space<vmem>>, vector<1x32xf32>
    %18 = vector.broadcast %17 : vector<1x32xf32> to vector<8x32xf32>
    %19 = arith.mulf %16, %18 : vector<8x32xf32>
    %c0_7 = arith.constant 0 : index
    %c0_8 = arith.constant 0 : index
    %20 = vector.load %arg4[%c0_7, %c0_8] : memref<1x32xf32, #tpu.memory_space<vmem>>, vector<1x32xf32>
    %21 = vector.broadcast %20 : vector<1x32xf32> to vector<8x32xf32>
    %22 = arith.addf %19, %21 : vector<8x32xf32>
    %c0_9 = arith.constant 0 : index
    %c0_10 = arith.constant 0 : index
    %23 = vector.load %arg5[%c0_9, %c0_10] : memref<32x128xf32, #tpu.memory_space<vmem>>, vector<32x128xf32>
    %cst_11 = arith.constant dense<0.000000e+00> : vector<8x128xf32>
    %24 = tpu.matmul %22, %23, %cst_11 {dimension_numbers = #tpu.dot_dimension_numbers<[1], [0], [0], [1], [0, 0, 1, 1], [], []>} : vector<8x32xf32>, vector<32x128xf32>, vector<8x128xf32> -> vector<8x128xf32>
    %c0_12 = arith.constant 0 : index
    %c0_13 = arith.constant 0 : index
    %25 = vector.load %arg6[%c0_12, %c0_13] : memref<1x128xf32, #tpu.memory_space<vmem>>, vector<1x128xf32>
    %26 = vector.broadcast %25 : vector<1x128xf32> to vector<8x128xf32>
    %27 = arith.addf %24, %26 : vector<8x128xf32>
    %c0_14 = arith.constant 0 : index
    %c0_15 = arith.constant 0 : index
    %28 = vector.load %arg7[%c0_14, %c0_15] : memref<8x128xf32, #tpu.memory_space<vmem>>, vector<8x128xf32>
    tpu.vector_store %arg7[%c0_14, %c0_15], %27 {strides = array<i32>} : memref<8x128xf32, #tpu.memory_space<vmem>>, vector<8x128xf32>,
    return
  }
  func.func @transform_0(%arg0: i32, %arg1: i32) -> (i32, i32) {
    %c0_i32 = arith.constant 0 : i32
    %c0_i32_0 = arith.constant 0 : i32
    return %arg0, %c0_i32 : i32, i32
  }
  func.func @transform_1(%arg0: i32, %arg1: i32) -> (i32, i32) {
    %c0_i32 = arith.constant 0 : i32
    %c0_i32_0 = arith.constant 0 : i32
    %c0_i32_1 = arith.constant 0 : i32
    return %c0_i32, %c0_i32_0 : i32, i32
  }
  func.func @transform_2(%arg0: i32, %arg1: i32) -> (i32, i32) {
    %c0_i32 = arith.constant 0 : i32
    %c0_i32_0 = arith.constant 0 : i32
    %c0_i32_1 = arith.constant 0 : i32
    return %c0_i32, %c0_i32_0 : i32, i32
  }
  func.func @transform_3(%arg0: i32, %arg1: i32) -> (i32, i32) {
    %c0_i32 = arith.constant 0 : i32
    %c0_i32_0 = arith.constant 0 : i32
    return %c0_i32, %arg1 : i32, i32
  }
  func.func @transform_4(%arg0: i32, %arg1: i32) -> (i32, i32) {
    %c0_i32 = arith.constant 0 : i32
    %c0_i32_0 = arith.constant 0 : i32
    return %c0_i32, %arg1 : i32, i32
  }
  func.func @transform_5(%arg0: i32, %arg1: i32) -> (i32, i32) {
    %c0_i32 = arith.constant 0 : i32
    return %arg0, %arg1 : i32, i32
  }
}

</mosaic_0001>

<llo_original>
// kernel: tpu_custom_call.1
$region0: #{tpu_custom_call.1}
  #allocation0 [shape = 'u32[]', space=smem, size = 0x4, offset = 0x4, fixed_abs, tag = 'smem constant byte address 0x4 - core index']
  #allocation1 [shape = 'u32[72,128]{1,0:T(1,128)}', space=vmem, size = 0x9000, scoped, tag = 'internal scratch']
  %s0 = inlined_call_operand.hbm [shape: f32[8,32], index: 0, kind: input, shape index: {}]
  %s1 = inlined_call_operand.hbm [shape: f32[1,32], index: 1, kind: input, shape index: {}]
  %s2 = inlined_call_operand.vmem [shape: f32[1,32], index: 2, kind: input, shape index: {}]
  %s3 = inlined_call_operand.hbm [shape: f32[32,128], index: 3, kind: input, shape index: {}]
  %s4 = inlined_call_operand.vmem [shape: f32[1,128], index: 4, kind: input, shape index: {}]
  %s5 = inlined_call_operand.hbm [shape: f32[8,128], index: 5, kind: output, shape index: {}]
  %s6 = sld [smem:[#allocation0]]
  $region42: #{tpu_custom_call.1} parent=0
    _
  %s8 = ssub.s32 1, %s6
  %s9 = scalar_select 0, %s8, %s6
  $region1: #{tpu_custom_call.1} parent=0
    #allocation2 [shape = 'u8[4096]{0}', space=vmem, size = 0x1000, scoped, tag = 'input window, operand 0, single buffered']
    #allocation3 [shape = 's32[1]{0}', space=sflag, size = 0x4, scoped, tag = 'scoped memory for tpu_custom_call.1']
    #allocation4 [shape = 's32[1]{0}', space=sflag, size = 0x4, scoped, tag = 'scoped memory for tpu_custom_call.1']
    #allocation5 [shape = 'u8[512]{0}', space=vmem, size = 0x400, scoped, tag = 'input window, operand 1, single buffered']
    #allocation6 [shape = 's32[1]{0}', space=sflag, size = 0x4, scoped, tag = 'scoped memory for tpu_custom_call.1']
    #allocation7 [shape = 'u8[16384]{0}', space=vmem, size = 0x4000, scoped, tag = 'input window, operand 3, single buffered']
    #allocation8 [shape = 'u8[4096]{0}', space=vmem, size = 0x1000, scoped, tag = 'output window, operand 0, single buffered']
    %10 = vsyncpa [#allocation3], 0
    %11 = vsyncpa [#allocation6], 0
    %12 = vsyncpa [#allocation4], 0
    // Predicated region
    $region2: #{tpu_custom_call.1} parent=1 // pred_check
      _
    $region3: #{tpu_custom_call.1} parent=1 // pred_check_branch
      %14 = sbr.rel (0) target = $region5
    $region4: #{tpu_custom_call.1} parent=1 // pred_region
      %16 = vsyncadd [#allocation3], 0
      %s18 = sshll.u32 %s0, 4
      %s19 = int_to_ptr.hbm [resolvable:$true] %s18
      %s20 = sshll.u32 [#allocation2], 4
      %s21 = int_to_ptr.vmem [resolvable:$true] %s20
      %23 = dma.hbm_to_vmem [thread:$0]  %s19, 128, %s21, [#allocation3]
    $region5: #{tpu_custom_call.1} parent=1 // pred_fallthru
      _
    // Predicated region
    $region6: #{tpu_custom_call.1} parent=1 // pred_check
      _
    $region7: #{tpu_custom_call.1} parent=1 // pred_check_branch
      %25 = sbr.rel (0) target = $region9
    $region8: #{tpu_custom_call.1} parent=1 // pred_region
      %27 = vsyncadd [#allocation6], 0
      %s29 = sshll.u32 %s1, 4
      %s30 = int_to_ptr.hbm [resolvable:$true] %s29
      %s31 = sshll.u32 [#allocation5], 4
      %s32 = int_to_ptr.vmem [resolvable:$true] %s31
      %34 = dma.hbm_to_vmem [thread:$0]  %s30, 16, %s32, [#allocation6]
    $region9: #{tpu_custom_call.1} parent=1 // pred_fallthru
      _
    // Predicated region
    $region10: #{tpu_custom_call.1} parent=1 // pred_check
      _
    $region11: #{tpu_custom_call.1} parent=1 // pred_check_branch
      %36 = sbr.rel (0) target = $region13
    $region12: #{tpu_custom_call.1} parent=1 // pred_region
      _
    $region13: #{tpu_custom_call.1} parent=1 // pred_fallthru
      _
    // Predicated region
    $region14: #{tpu_custom_call.1} parent=1 // pred_check
      _
    $region15: #{tpu_custom_call.1} parent=1 // pred_check_branch
      %38 = sbr.rel (0) target = $region17
    $region16: #{tpu_custom_call.1} parent=1 // pred_region
      %40 = vsyncadd [#allocation6], 0
      %s41 = sshll.u32 %s3, 4
      %s42 = int_to_ptr.hbm [resolvable:$true] %s41
      %s43 = sshll.u32 [#allocation7], 4
      %s44 = int_to_ptr.vmem [resolvable:$true] %s43
      %49 = dma.hbm_to_vmem [thread:$0]  %s42, 512, %s44, [#allocation6], 128, 128, 8
    $region17: #{tpu_custom_call.1} parent=1 // pred_fallthru
      _
    // Predicated region
    $region18: #{tpu_custom_call.1} parent=1 // pred_check
      _
    $region19: #{tpu_custom_call.1} parent=1 // pred_check_branch
      %51 = sbr.rel (0) target = $region21
    $region20: #{tpu_custom_call.1} parent=1 // pred_region
      _
    $region21: #{tpu_custom_call.1} parent=1 // pred_fallthru
      _
    // Predicated region
    $region22: #{tpu_custom_call.1} parent=1 // pred_check
      _
    $region23: #{tpu_custom_call.1} parent=1 // pred_check_branch
      %53 = sbr.rel (0) target = $region25
    $region24: #{tpu_custom_call.1} parent=1 // pred_region
      %55 = dma.done [#allocation3], 128
    $region25: #{tpu_custom_call.1} parent=1 // pred_fallthru
      _
    // Predicated region
    $region26: #{tpu_custom_call.1} parent=1 // pred_check
      _
    $region27: #{tpu_custom_call.1} parent=1 // pred_check_branch
      %57 = sbr.rel (0) target = $region29
    $region28: #{tpu_custom_call.1} parent=1 // pred_region
      %59 = dma.done [#allocation6], 16
    $region29: #{tpu_custom_call.1} parent=1 // pred_fallthru
      _
    // Predicated region
    $region30: #{tpu_custom_call.1} parent=1 // pred_check
      _
    $region31: #{tpu_custom_call.1} parent=1 // pred_check_branch
      %61 = sbr.rel (0) target = $region33
    $region32: #{tpu_custom_call.1} parent=1 // pred_region
      %63 = dma.done [#allocation6], 512
    $region33: #{tpu_custom_call.1} parent=1 // pred_fallthru
      _
    %v64 = vld [vmem:[#allocation2] sm:$0xff]
    %vm65 = vcmask 261120
    %v66 = vsel %vm65, %v64, 0.0
    %67 = vadd.xlane.f32.xlu0 %v66
    %v68 = vpop.xlane.xlu0 %67
    %v69 = vrcp.pop 32.0
    %v70 = vmul.f32 32.0, %v69
    %v71 = vsub.f32 1.0, %v70
    %v72 = vmul.f32 %v69, %v71
    %v73 = vadd.f32 %v69, %v72
    %vm74 = vweird.f32 %v69
    %v75 = vsel %vm74, %v69, %v73
    %v76 = vmul.f32 %v68, %v75
    %v77 = vsub.f32 %v64, %v76
    %v78 = vmul.f32 %v77, %v77
    %v79 = vsel %vm65, %v78, 0.0
    %80 = vadd.xlane.f32.xlu0 %v79
    %v81 = vpop.xlane.xlu0 %80
    %v82 = vmul.f32 %v81, %v75
    %v83 = vadd.f32 %v82, 1e-05
    %v84 = vrsqrt.pop %v83
    %v85 = vmul.f32 %v84, %v83
    %v86 = vmul.f32 %v85, %v84
    %v87 = vmul.f32 0.5, %v86
    %v88 = vsub.f32 1.5, %v87
    %v89 = vmul.f32 %v84, %v88
    %vm90 = vweird.f32 %v83
    %vm91 = vweird.f32 %v84
    %vm92 = vmor %vm90, %vm91
    %v93 = vsel %vm92, %v84, %v89
    %v94 = vmul.f32 %v77, %v93
    %v95 = vld [vmem:[#allocation5] sm:$0x1]
    %v97 = vperm.slane %v95, 0
    %v99 = vmul.f32 %v94, %v97
    %v100 = vld [vmem:[%s2] sm:$0x1]
    %v102 = vperm.slane %v100, 0
    %v104 = vadd.f32 %v99, %v102
    %v105 = vld [vmem:[#allocation7] sm:$0xff]
    %v106 = vld [vmem:[#allocation7 + $0x8] sm:$0xff]
    %v107 = vld [vmem:[#allocation7 + $0x10] sm:$0xff]
    %v108 = vld [vmem:[#allocation7 + $0x18] sm:$0xff]
    %v109 = vld [vmem:[%s4] sm:$0x1]
    %v111 = vperm.slane %v109, 0
    %v114 = vsel %vm65, %v104, 0
    %116 = vmatpush.msra.mxu0 0.0
    %117 = vmatpush.msra.mxu0 0.0
    %118 = vmatpush.msra.mxu0 0.0
    %119 = vmatpush.msra.mxu0 0.0
    %120 = vmatpush.msra.mxu0 0.0
    %121 = vmatpush.msra.mxu0 0.0
    %122 = vmatpush.msra.mxu0 0.0
    %123 = vmatpush.msra.mxu0 0.0
    %124 = vmatpush.msra.mxu0 0.0
    %125 = vmatpush.msra.mxu0 0.0
    %126 = vmatpush.msra.mxu0 0.0
    %127 = vmatpush.msra.mxu0 0.0
    %128 = vmatpush.msra.mxu0 %v108
    %129 = vmatpush.msra.mxu0 %v107
    %130 = vmatpush.msra.mxu0 %v106
    %131 = vmatpush.msra.mxu0 %v105
    %132 = vmatmul.f32.gmra.mxu0 %v114
    %v133 = vpop.f32.mrf.mxu0
    %v134 = vadd.f32 %v111, %v133
    %135 = vdwg.mxu0
    %136 = vst [vmem:[#allocation8] sm:$0xff] %v134
    // Predicated region
    $region34: #{tpu_custom_call.1} parent=1 // pred_check
      _
    $region35: #{tpu_custom_call.1} parent=1 // pred_check_branch
      %138 = sbr.rel (0) target = $region37
    $region36: #{tpu_custom_call.1} parent=1 // pred_region
      %140 = vsyncadd [#allocation4], 0
      %s142 = sshll.u32 [#allocation8], 4
      %s143 = int_to_ptr.vmem [resolvable:$true] %s142
      %s144 = sshll.u32 %s5, 4
      %s145 = int_to_ptr.hbm [resolvable:$true] %s144
      %147 = dma.vmem_to_hbm [thread:$0]  %s143, 128, %s145, [#allocation4]
    $region37: #{tpu_custom_call.1} parent=1 // pred_fallthru
      _
    // Predicated region
    $region38: #{tpu_custom_call.1} parent=1 // pred_check
      _
    $region39: #{tpu_custom_call.1} parent=1 // pred_check_branch
      %149 = sbr.rel (0) target = $region41
    $region40: #{tpu_custom_call.1} parent=1 // pred_region
      %151 = dma.done [#allocation4], 128
    $region41: #{tpu_custom_call.1} parent=1 // pred_fallthru
      _
    %152 = vsyncpa [#allocation3], 1
    %153 = vsyncpa [#allocation6], 1
    %154 = vsyncpa [#allocation4], 1

</llo_original>
